<compile_context>
chip_gen: v6e
topology: v6e:2x2x1
jax: 0.10.0
libtpu: 0.0.40
codegen_flags: <defaults>
</compile_context>

<pallas_src>
import functools

import jax
import jax.numpy as jnp
from jax.experimental import pallas as pl
from jax.experimental.pallas import tpu as pltpu


# ---------------------------------------------------------------------------
# Tiling / VMEM budget
# ---------------------------------------------------------------------------
_VMEM_LIMIT_BYTES = 48 * 1024 * 1024   # > every scoped default, < v7x 64 MiB physical
_LN_BLOCK_BYTES = 4 * 1024 * 1024      # (x + out) x 2 buffers ~= 16 MiB working set
_ADD_BLOCK_BYTES = 2 * 1024 * 1024     # 3 streams x 2 buffers ~= 12 MiB working set


def _row_tile(num_rows, row_bytes, max_block_bytes, max_rows=8192, min_steps=2):
    """Sublane-friendly row tile (multiple of 8) with block <= max_block_bytes.

    Block size is chosen by bytes (no small row cap strangling small-D tiles),
    and when there are enough rows we keep >= `min_steps` grid steps so
    dimension_semantics=("parallel",) can feed both v7x TensorCores.
    """
    if num_rows <= 8:
        return num_rows                                  # full extent -> always legal
    cap = max(8, max_block_bytes // max(row_bytes, 1))
    tr = min(num_rows, max_rows, cap)
    if num_rows >= 16:
        tr = min(tr, -(-num_rows // min_steps))          # keep >= min_steps grid steps
    return max(8, (tr // 8) * 8)


# ---------------------------------------------------------------------------
# LayerNorm kernel (PyTorch nn.LayerNorm semantics over the last dim)
# ---------------------------------------------------------------------------
def _layernorm_kernel(x_ref, g_ref, b_ref, o_ref, *, eps):
    x = x_ref[...].astype(jnp.float32)                    # (TR, D)
    # Two independent cross-lane reductions (they overlap in the XLU) instead of
    # the dependent mean -> center -> mean(xc*xc) chain: one fewer VPU pass over
    # the tile. E[x^2]-mean^2 in f32 is accurate for LN-scale activations; the
    # maximum() guards against tiny negative variance from cancellation.
    mean = jnp.mean(x, axis=-1, keepdims=True)
    mean_sq = jnp.mean(x * x, axis=-1, keepdims=True)
    var = jnp.maximum(mean_sq - mean * mean, 0.0)         # biased var, like PyTorch
    scale = jax.lax.rsqrt(var + eps)
    g = g_ref[...].astype(jnp.float32)                    # (1, D)
    b = b_ref[...].astype(jnp.float32)                    # (1, D)
    o_ref[...] = ((x - mean) * scale * g + b).astype(o_ref.dtype)


def layernorm_pallas(x2, gamma, beta, eps=1e-5):
    """x2: (R, D). gamma/beta: (D,). Returns LayerNorm(x2) in x2.dtype."""
    R, D = x2.shape
    tr = _row_tile(R, D * x2.dtype.itemsize, _LN_BLOCK_BYTES)
    g2 = gamma.reshape(1, D)
    b2 = beta.reshape(1, D)
    return pl.pallas_call(
        functools.partial(_layernorm_kernel, eps=eps),
        out_shape=jax.ShapeDtypeStruct((R, D), x2.dtype),
        grid_spec=pltpu.PrefetchScalarGridSpec(
            num_scalar_prefetch=0,
            grid=(pl.cdiv(R, tr),),
            in_specs=[
                pl.BlockSpec((tr, D), lambda i: (i, 0)),
                pl.BlockSpec((1, D), lambda i: (0, 0)),
                pl.BlockSpec((1, D), lambda i: (0, 0)),
            ],
            out_specs=pl.BlockSpec((tr, D), lambda i: (i, 0)),
        ),
        compiler_params=pltpu.CompilerParams(
            dimension_semantics=("parallel",),
            vmem_limit_bytes=_VMEM_LIMIT_BYTES),
    )(x2, g2, b2)


# ---------------------------------------------------------------------------
# Residual-add kernel (fused cast + add, lane-dense flattened view)
# ---------------------------------------------------------------------------
def _add_kernel(y_ref, x_ref, o_ref):
    # Sum in the promoted dtype (e.g. f32 fn-output + bf16 residual), cast once.
    o_ref[...] = (y_ref[...] + x_ref[...]).astype(o_ref.dtype)


def residual_add_pallas(y, x):
    """out = (y + x) cast to x.dtype; y may be a wider dtype than x."""
    assert y.shape == x.shape
    n = x.size
    lane = None
    for cand in (512, 1024, 2048, 256, 128):   # >=512 lanes ~ HBM roofline for adds
        if n % cand == 0:
            lane = cand
            break
    yf = y.reshape(-1)
    xf = x.reshape(-1)
    if lane is None:
        # Pad to a multiple of 128 so blocks stay bounded and stores unmasked.
        lane = 128
        pad = (-n) % lane
        yf = jnp.pad(yf, (0, pad))
        xf = jnp.pad(xf, (0, pad))
    rows = yf.size // lane
    y2 = yf.reshape(rows, lane)
    x2 = xf.reshape(rows, lane)
    row_bytes = lane * max(y.dtype.itemsize, x.dtype.itemsize)
    tr = _row_tile(rows, row_bytes, _ADD_BLOCK_BYTES)
    out2 = pl.pallas_call(
        _add_kernel,
        out_shape=jax.ShapeDtypeStruct((rows, lane), x.dtype),
        grid_spec=pltpu.PrefetchScalarGridSpec(
            num_scalar_prefetch=0,
            grid=(pl.cdiv(rows, tr),),
            in_specs=[pl.BlockSpec((tr, lane), lambda i: (i, 0)),
                      pl.BlockSpec((tr, lane), lambda i: (i, 0))],
            out_specs=pl.BlockSpec((tr, lane), lambda i: (i, 0)),
        ),
        compiler_params=pltpu.CompilerParams(
            dimension_semantics=("parallel",),
            vmem_limit_bytes=_VMEM_LIMIT_BYTES),
    )(y2, x2)
    return out2.reshape(-1)[:n].reshape(x.shape)


# ---------------------------------------------------------------------------
# PreNormResidual forward
# ---------------------------------------------------------------------------
def pre_norm_residual(x, gamma, beta, fn, window_height=None, window_width=None,
                      eps=1e-5):
    """out = fn(LayerNorm(x)[, window_height, window_width]) + x."""
    D = x.shape[-1]
    # TODO(synk): when D < 128, lane-packing k=128//D rows per vreg (segmented LN)
    # would make LN loads/stores lane-dense; left unpacked since production D >= 128.
    normed = layernorm_pallas(x.reshape(-1, D), gamma, beta, eps=eps).reshape(x.shape)
    # TODO(synk): `fn` is an arbitrary wrapped sub-module (attention / MBConv / MLP
    # in MaxSR) and runs here as plain JAX; fusing the LN prologue / residual
    # epilogue into a Pallas `fn` kernel would remove a full write+read of HBM.
    if window_height is None or window_width is None:
        y = fn(normed)
    else:
        y = fn(normed, window_height, window_width)
    return residual_add_pallas(y, x)   # cast-to-x.dtype + residual add fused


if __name__ == "__main__":
    key = jax.random.PRNGKey(0)
    kx, kg, kb, kw1, kw2 = jax.random.split(key, 5)

    B, H, W, D = 2, 8, 8, 32            # MaxViT-style (batch, height, width, dim)
    HID = 2 * D

    x = jax.random.normal(kx, (B, H, W, D), dtype=jnp.float32)
    gamma = 1.0 + 0.1 * jax.random.normal(kg, (D,), dtype=jnp.float32)
    beta = 0.1 * jax.random.normal(kb, (D,), dtype=jnp.float32)
    w1 = jax.random.normal(kw1, (D, HID), dtype=jnp.float32) / jnp.sqrt(D)
    w2 = jax.random.normal(kw2, (HID, D), dtype=jnp.float32) / jnp.sqrt(float(HID))

    def mlp(z):                          # stand-in for the wrapped `fn`
        return jax.nn.gelu(z @ w1) @ w2

    def mlp_windowed(z, wh, ww):         # exercises the windowed call path
        del wh, ww
        return mlp(z)

    # Kernel path (both forward branches)
    y = jax.block_until_ready(pre_norm_residual(x, gamma, beta, mlp))
    y_win = jax.block_until_ready(
        pre_norm_residual(x, gamma, beta, mlp_windowed,
                          window_height=H, window_width=W))

    # Pure-JAX reference
    mean = jnp.mean(x, axis=-1, keepdims=True)
    var = jnp.mean((x - mean) ** 2, axis=-1, keepdims=True)
    normed_ref = (x - mean) * jax.lax.rsqrt(var + 1e-5) * gamma + beta
    y_ref = mlp(normed_ref) + x

    assert y.shape == x.shape and y.dtype == x.dtype
    assert jnp.allclose(y, y_ref, atol=1e-5, rtol=1e-5), "mismatch vs reference"
    assert jnp.allclose(y_win, y_ref, atol=1e-5, rtol=1e-5), "windowed path mismatch"

    # Exercise the padded (non-128-multiple) residual-add fallback path.
    ka, kb2 = jax.random.split(jax.random.PRNGKey(1))
    a_odd = jax.random.normal(ka, (3, 50), dtype=jnp.float32)
    b_odd = jax.random.normal(kb2, (3, 50), dtype=jnp.float32)
    s_odd = jax.block_until_ready(residual_add_pallas(a_odd, b_odd))
    assert jnp.allclose(s_odd, a_odd + b_odd, atol=1e-6, rtol=1e-6), "padded add mismatch"

    print("KERNEL_OK")
</pallas_src>

<mosaic_0001>
module attributes {stable_mosaic.version = 11 : i64} {
  func.func @_layernorm_kernel(%arg0: i32, %arg1: memref<64x32xf32, #tpu.memory_space<vmem>>, %arg2: memref<1x32xf32, #tpu.memory_space<vmem>>, %arg3: memref<1x32xf32, #tpu.memory_space<vmem>>, %arg4: memref<64x32xf32, #tpu.memory_space<vmem>>) attributes {dimension_semantics = [#tpu.dimension_semantics<parallel>], iteration_bounds = array<i64: 2>, scalar_prefetch = 0 : i64, scratch_operands = 0 : i64, tpu.core_type = #tpu.core_type<tc>, window_params = [{transform_indices = @transform_0, window_bounds = array<i64: 64, 32>}, {pipeline_mode = #tpu.pipeline_mode<synchronous>, transform_indices = @transform_1, window_bounds = array<i64: 1, 32>}, {pipeline_mode = #tpu.pipeline_mode<synchronous>, transform_indices = @transform_2, window_bounds = array<i64: 1, 32>}, {transform_indices = @transform_3, window_bounds = array<i64: 64, 32>}]} {
    %c0 = arith.constant 0 : index
    %c0_0 = arith.constant 0 : index
    %0 = vector.load %arg1[%c0, %c0_0] : memref<64x32xf32, #tpu.memory_space<vmem>>, vector<64x32xf32>
    %cst = arith.constant dense<0.000000e+00> : vector<64xf32>
    %1 = vector.multi_reduction <add>, %0, %cst [1] : vector<64x32xf32> to vector<64xf32>
    %2 = vector.shape_cast %1 : vector<64xf32> to vector<64x1xf32>
    %cst_1 = arith.constant 3.200000e+01 : f32
    %3 = vector.broadcast %cst_1 : f32 to vector<64x1xf32>
    %4 = arith.divf %2, %3 : vector<64x1xf32>
    %5 = arith.mulf %0, %0 : vector<64x32xf32>
    %cst_2 = arith.constant dense<0.000000e+00> : vector<64xf32>
    %6 = vector.multi_reduction <add>, %5, %cst_2 [1] : vector<64x32xf32> to vector<64xf32>
    %7 = vector.shape_cast %6 : vector<64xf32> to vector<64x1xf32>
    %cst_3 = arith.constant 3.200000e+01 : f32
    %8 = vector.broadcast %cst_3 : f32 to vector<64x1xf32>
    %9 = arith.divf %7, %8 : vector<64x1xf32>
    %10 = arith.mulf %4, %4 : vector<64x1xf32>
    %11 = arith.subf %9, %10 : vector<64x1xf32>
    %cst_4 = arith.constant 0.000000e+00 : f32
    %12 = vector.broadcast %cst_4 : f32 to vector<64x1xf32>
    %13 = arith.maximumf %11, %12 : vector<64x1xf32>
    %cst_5 = arith.constant 9.99999974E-6 : f32
    %14 = vector.broadcast %cst_5 : f32 to vector<64x1xf32>
    %15 = arith.addf %13, %14 : vector<64x1xf32>
    %16 = math.rsqrt %15 : vector<64x1xf32>
    %c0_6 = arith.constant 0 : index
    %c0_7 = arith.constant 0 : index
    %17 = vector.load %arg2[%c0_6, %c0_7] : memref<1x32xf32, #tpu.memory_space<vmem>>, vector<1x32xf32>
    %c0_8 = arith.constant 0 : index
    %c0_9 = arith.constant 0 : index
    %18 = vector.load %arg3[%c0_8, %c0_9] : memref<1x32xf32, #tpu.memory_space<vmem>>, vector<1x32xf32>
    %19 = vector.broadcast %4 : vector<64x1xf32> to vector<64x32xf32>
    %20 = arith.subf %0, %19 : vector<64x32xf32>
    %21 = vector.broadcast %16 : vector<64x1xf32> to vector<64x32xf32>
    %22 = arith.mulf %20, %21 : vector<64x32xf32>
    %23 = vector.broadcast %17 : vector<1x32xf32> to vector<64x32xf32>
    %24 = arith.mulf %22, %23 : vector<64x32xf32>
    %25 = vector.broadcast %18 : vector<1x32xf32> to vector<64x32xf32>
    %26 = arith.addf %24, %25 : vector<64x32xf32>
    %c0_10 = arith.constant 0 : index
    %c0_11 = arith.constant 0 : index
    %27 = vector.load %arg4[%c0_10, %c0_11] : memref<64x32xf32, #tpu.memory_space<vmem>>, vector<64x32xf32>
    tpu.vector_store %arg4[%c0_10, %c0_11], %26 {strides = array<i32>} : memref<64x32xf32, #tpu.memory_space<vmem>>, vector<64x32xf32>,
    return
  }
  func.func @transform_0(%arg0: i32) -> (i32, i32) {
    %c0_i32 = arith.constant 0 : i32
    %c0_i32_0 = arith.constant 0 : i32
    return %arg0, %c0_i32 : i32, i32
  }
  func.func @transform_1(%arg0: i32) -> (i32, i32) {
    %c0_i32 = arith.constant 0 : i32
    %c0_i32_0 = arith.constant 0 : i32
    %c0_i32_1 = arith.constant 0 : i32
    return %c0_i32, %c0_i32_0 : i32, i32
  }
  func.func @transform_2(%arg0: i32) -> (i32, i32) {
    %c0_i32 = arith.constant 0 : i32
    %c0_i32_0 = arith.constant 0 : i32
    %c0_i32_1 = arith.constant 0 : i32
    return %c0_i32, %c0_i32_0 : i32, i32
  }
  func.func @transform_3(%arg0: i32) -> (i32, i32) {
    %c0_i32 = arith.constant 0 : i32
    %c0_i32_0 = arith.constant 0 : i32
    return %arg0, %c0_i32 : i32, i32
  }
}

</mosaic_0001>

<llo_original>
// kernel: tpu_custom_call.1
$region0: #{tpu_custom_call.1}
  #allocation0 [shape = 'u32[]', space=smem, size = 0x4, offset = 0x4, fixed_abs, tag = 'smem constant byte address 0x4 - core index']
  #allocation1 [shape = 'u32[144,128]{1,0:T(1,128)}', space=vmem, size = 0x12000, scoped, tag = 'internal scratch']
  %s0 = inlined_call_operand.vmem [shape: f32[128,32], index: 0, kind: input, shape index: {}]
  %s1 = inlined_call_operand.vmem [shape: f32[1,32], index: 1, kind: input, shape index: {}]
  %s2 = inlined_call_operand.vmem [shape: f32[1,32], index: 2, kind: input, shape index: {}]
  %s3 = inlined_call_operand.vmem [shape: f32[128,32], index: 3, kind: output, shape index: {}]
  %s4 = sld [smem:[#allocation0]]
  $region45: #{tpu_custom_call.1} parent=0
    _
  %s6 = ssub.s32 1, %s4
  %s7 = scalar_select 0, %s6, %s4
  loop: start=0, step=1, limit=4
  $region2: #{tpu_custom_call.1} parent=0 // loop_pre_header
    _
  $region3: #{tpu_custom_call.1} parent=0 // loop_header
    %s9 = sphi 0, %s13
    %p10 = scmp.ge.s32.totalorder %s9, 4
    %s19 = sphi 0, %s21
    %s22 = sphi 0, %s19
    %s23 = sphi 0, %s22
    %s39 = sphi 0, %s23
    %s43 = sphi 0, %s43
    %s45 = sphi 0, %s43
    %s46 = sphi 0, %s45
    %s60 = sphi 0, %s46
    %s64 = sphi 0, %s64
    %s66 = sphi 0, %s64
    %s67 = sphi 0, %s66
    %s81 = sphi 0, %s67
    %s87 = sphi 0, %s89
    %s90 = sphi 0, %s87
    %s91 = sphi 0, %s90
    %s107 = sphi 0, %s91
  $region4: #{tpu_custom_call.1} parent=0 // loop_header_branch
    %12 = sbr.rel (%p10) target = $region8
  $region5: #{tpu_custom_call.1} parent=0 // loop_body
    %s14 = ssub.s32 %s9, 1
    %s15 = ssub.s32 %s9, 2
    %s16 = sadd.s32 %s9, 1
    %s17 = ssub.s32 %s9, %s16
    %p18 = scmp.eq.s32.totalorder %s17, 0
    %s20 = sadd.s32 %s19, 1
    %s21 = scalar_select %p18, %s19, %s20
    %p24 = pneg %p18
    %p25 = scmp.eq.s32.totalorder %s9, 1
    %p26 = por %p24, %p25
    %p27 = scmp.ne.s32.totalorder %s19, %s22
    %p28 = scmp.eq.s32.totalorder %s9, 0
    %p29 = por %p27, %p28
    %p30 = scmp.ne.s32.totalorder %s19, %s22
    %p31 = scmp.eq.s32.totalorder %s14, 1
    %p32 = por %p30, %p31
    %p33 = scmp.ne.s32.totalorder %s22, %s23
    %p34 = scmp.eq.s32.totalorder %s14, 0
    %p35 = por %p33, %p34
    %p36 = scmp.ne.s32.totalorder %s22, %s23
    %p37 = scmp.eq.s32.totalorder %s15, 1
    %p38 = por %p36, %p37
    %p40 = scmp.ne.s32.totalorder %s23, %s39
    %p41 = scmp.eq.s32.totalorder %s15, 0
    %p42 = por %p40, %p41
    %s44 = sadd.s32 %s43, 1
    %p47 = scmp.eq.s32.totalorder %s9, 1
    %p48 = scmp.ne.s32.totalorder %s43, %s45
    %p49 = scmp.eq.s32.totalorder %s9, 0
    %p50 = por %p48, %p49
    %p51 = scmp.ne.s32.totalorder %s43, %s45
    %p52 = scmp.eq.s32.totalorder %s14, 1
    %p53 = por %p51, %p52
    %p54 = scmp.ne.s32.totalorder %s45, %s46
    %p55 = scmp.eq.s32.totalorder %s14, 0
    %p56 = por %p54, %p55
    %p57 = scmp.ne.s32.totalorder %s45, %s46
    %p58 = scmp.eq.s32.totalorder %s15, 1
    %p59 = por %p57, %p58
    %p61 = scmp.ne.s32.totalorder %s46, %s60
    %p62 = scmp.eq.s32.totalorder %s15, 0
    %p63 = por %p61, %p62
    %s65 = sadd.s32 %s64, 1
    %p68 = scmp.eq.s32.totalorder %s9, 1
    %p69 = scmp.ne.s32.totalorder %s64, %s66
    %p70 = scmp.eq.s32.totalorder %s9, 0
    %p71 = por %p69, %p70
    %p72 = scmp.ne.s32.totalorder %s64, %s66
    %p73 = scmp.eq.s32.totalorder %s14, 1
    %p74 = por %p72, %p73
    %p75 = scmp.ne.s32.totalorder %s66, %s67
    %p76 = scmp.eq.s32.totalorder %s14, 0
    %p77 = por %p75, %p76
    %p78 = scmp.ne.s32.totalorder %s66, %s67
    %p79 = scmp.eq.s32.totalorder %s15, 1
    %p80 = por %p78, %p79
    %p82 = scmp.ne.s32.totalorder %s67, %s81
    %p83 = scmp.eq.s32.totalorder %s15, 0
    %p84 = por %p82, %p83
    %s85 = ssub.s32 %s9, %s16
    %p86 = scmp.eq.s32.totalorder %s85, 0
    %s88 = sadd.s32 %s87, 1
    %s89 = scalar_select %p86, %s87, %s88
    %p92 = pneg %p86
    %p93 = scmp.eq.s32.totalorder %s9, 1
    %p94 = por %p92, %p93
    %p95 = scmp.ne.s32.totalorder %s87, %s90
    %p96 = scmp.eq.s32.totalorder %s9, 0
    %p97 = por %p95, %p96
    %p98 = scmp.ne.s32.totalorder %s87, %s90
    %p99 = scmp.eq.s32.totalorder %s14, 1
    %p100 = por %p98, %p99
    %p101 = scmp.ne.s32.totalorder %s90, %s91
    %p102 = scmp.eq.s32.totalorder %s14, 0
    %p103 = por %p101, %p102
    %p104 = scmp.ne.s32.totalorder %s90, %s91
    %p105 = scmp.eq.s32.totalorder %s15, 1
    %p106 = por %p104, %p105
    %p108 = scmp.ne.s32.totalorder %s91, %s107
    %p109 = scmp.eq.s32.totalorder %s15, 0
    %p110 = por %p108, %p109
    %p111 = scmp.le.s32.totalorder 1, %s9
    %p112 = scmp.lt.s32.totalorder %s9, 3
    %p113 = pnand %p111, %p112
    %p114 = pneg %p113
    // Predicated region
    $region9: #{tpu_custom_call.1} parent=5 // pred_check
      _
    $region10: #{tpu_custom_call.1} parent=5 // pred_check_branch
      %116 = sbr.rel (%p113) target = $region12
    $region11: #{tpu_custom_call.1} parent=5 // pred_region
      %s117 = ssub.s32 %s9, 1
      // Predicated region
      $region13: #{tpu_custom_call.1} parent=11 // pred_check
        %p118 = pneg %p56
      $region14: #{tpu_custom_call.1} parent=11 // pred_check_branch
        %120 = sbr.rel (%p118) target = $region16
      $region15: #{tpu_custom_call.1} parent=11 // pred_region
        _
      $region16: #{tpu_custom_call.1} parent=11 // pred_fallthru
        _
      // Predicated region
      $region17: #{tpu_custom_call.1} parent=11 // pred_check
        %p121 = pneg %p77
      $region18: #{tpu_custom_call.1} parent=11 // pred_check_branch
        %123 = sbr.rel (%p121) target = $region20
      $region19: #{tpu_custom_call.1} parent=11 // pred_region
        _
      $region20: #{tpu_custom_call.1} parent=11 // pred_fallthru
        _
    $region12: #{tpu_custom_call.1} parent=5 // pred_fallthru
      _
    %p124 = scmp.lt.s32.totalorder %s9, 2
    // Predicated region
    $region21: #{tpu_custom_call.1} parent=5 // pred_check
      %p125 = pneg %p124
    $region22: #{tpu_custom_call.1} parent=5 // pred_check_branch
      %127 = sbr.rel (%p125) target = $region24
    $region23: #{tpu_custom_call.1} parent=5 // pred_region
      // Predicated region
      $region25: #{tpu_custom_call.1} parent=23 // pred_check
        %p128 = pneg %p29
      $region26: #{tpu_custom_call.1} parent=23 // pred_check_branch
        %130 = sbr.rel (%p128) target = $region28
      $region27: #{tpu_custom_call.1} parent=23 // pred_region
        %s131 = smul.u32 8, %s9
        %p132 = scmp.lt.s32.totalorder %s131, 15
        %s133 = scalar_select %p132, %s131, 15
        %s134 = smul.addr %s133, 8
        %s135 = scalar_lea.vmem %s0, %s134
        %s136 = smul.u32 8, %s9
      $region28: #{tpu_custom_call.1} parent=23 // pred_fallthru
        _
    $region24: #{tpu_custom_call.1} parent=5 // pred_fallthru
      _
    %p137 = scmp.le.s32.totalorder 1, %s9
    %p138 = scmp.lt.s32.totalorder %s9, 3
    %p139 = pnand %p137, %p138
    %p140 = pneg %p139
    // Predicated region
    $region29: #{tpu_custom_call.1} parent=5 // pred_check
      _
    $region30: #{tpu_custom_call.1} parent=5 // pred_check_branch
      %142 = sbr.rel (%p139) target = $region32
    $region31: #{tpu_custom_call.1} parent=5 // pred_region
      %s143 = ssub.s32 %s9, 1
      %s144 = smul.u32 8, %s14
      %p145 = scmp.lt.s32.totalorder %s144, 15
      %s146 = scalar_select %p145, %s144, 15
      %s147 = smul.addr %s146, 8
      %s148 = scalar_lea.vmem %s0, %s147
      %p149 = pneg %p35
      %p150 = pneg %p32
      %p151 = pneg %p56
      %p152 = pneg %p53
      %p153 = pneg %p77
      %p154 = pneg %p74
      %p155 = pneg %p103
      %p156 = pneg %p100
      %s157 = smul.u32 8, %s14
      %p158 = scmp.lt.s32.totalorder %s157, 15
      %s159 = scalar_select %p158, %s157, 15
      %s160 = smul.addr %s159, 8
      %s161 = scalar_lea.vmem %s3, %s160
      %s162 = smul.u32 8, %s14
      %p163 = scmp.lt.s32.totalorder %s162, 15
      %s164 = scalar_select %p163, %s162, 15
      %s165 = smul.addr %s164, 8
      %s166 = scalar_lea.vmem %s0, %s165
      %s167 = smul.u32 8, %s14
      %s168 = smul.u32 8, %s14
      %p169 = scmp.lt.s32.totalorder %s168, 15
      %s170 = scalar_select %p169, %s168, 15
      %s171 = smul.addr %s170, 8
      %s172 = scalar_lea.vmem %s3, %s171
      %s173 = smul.u32 8, %s14
      %v174 = vld [vmem:[%s166] sm:$0xff]
      %v175 = vld [vmem:[%s166 + $0x8] sm:$0xff]
      %v176 = vld [vmem:[%s166 + $0x10] sm:$0xff]
      %v177 = vld [vmem:[%s166 + $0x18] sm:$0xff]
      %v178 = vld [vmem:[%s166 + $0x20] sm:$0xff]
      %v179 = vld [vmem:[%s166 + $0x28] sm:$0xff]
      %v180 = vld [vmem:[%s166 + $0x30] sm:$0xff]
      %v181 = vld [vmem:[%s166 + $0x38] sm:$0xff]
      %vm182 = vcmask 261120
      %v183 = vsel %vm182, %v174, 0.0
      %184 = vadd.xlane.f32.xlu0 %v183
      %v185 = vpop.xlane.xlu0 %184
      %v186 = vsel %vm182, %v175, 0.0
      %187 = vadd.xlane.f32.xlu0 %v186
      %v188 = vpop.xlane.xlu0 %187
      %v189 = vsel %vm182, %v176, 0.0
      %190 = vadd.xlane.f32.xlu0 %v189
      %v191 = vpop.xlane.xlu0 %190
      %v192 = vsel %vm182, %v177, 0.0
      %193 = vadd.xlane.f32.xlu0 %v192
      %v194 = vpop.xlane.xlu0 %193
      %v195 = vsel %vm182, %v178, 0.0
      %196 = vadd.xlane.f32.xlu0 %v195
      %v197 = vpop.xlane.xlu0 %196
      %v198 = vsel %vm182, %v179, 0.0
      %199 = vadd.xlane.f32.xlu0 %v198
      %v200 = vpop.xlane.xlu0 %199
      %v201 = vsel %vm182, %v180, 0.0
      %202 = vadd.xlane.f32.xlu0 %v201
      %v203 = vpop.xlane.xlu0 %202
      %v204 = vsel %vm182, %v181, 0.0
      %205 = vadd.xlane.f32.xlu0 %v204
      %v206 = vpop.xlane.xlu0 %205
      %v207 = vrcp.pop 32.0
      %v208 = vmul.f32 %v185, %v207
      %v209 = vmul.f32 %v188, %v207
      %v210 = vmul.f32 %v191, %v207
      %v211 = vmul.f32 %v194, %v207
      %v212 = vmul.f32 %v197, %v207
      %v213 = vmul.f32 %v200, %v207
      %v214 = vmul.f32 %v203, %v207
      %v215 = vmul.f32 %v206, %v207
      %v216 = vmul.f32 %v174, %v174
      %v217 = vmul.f32 %v175, %v175
      %v218 = vmul.f32 %v176, %v176
      %v219 = vmul.f32 %v177, %v177
      %v220 = vmul.f32 %v178, %v178
      %v221 = vmul.f32 %v179, %v179
      %v222 = vmul.f32 %v180, %v180
      %v223 = vmul.f32 %v181, %v181
      %v224 = vsel %vm182, %v216, 0.0
      %225 = vadd.xlane.f32.xlu0 %v224
      %v226 = vpop.xlane.xlu0 %225
      %v227 = vsel %vm182, %v217, 0.0
      %228 = vadd.xlane.f32.xlu0 %v227
      %v229 = vpop.xlane.xlu0 %228
      %v230 = vsel %vm182, %v218, 0.0
      %231 = vadd.xlane.f32.xlu0 %v230
      %v232 = vpop.xlane.xlu0 %231
      %v233 = vsel %vm182, %v219, 0.0
      %234 = vadd.xlane.f32.xlu0 %v233
      %v235 = vpop.xlane.xlu0 %234
      %v236 = vsel %vm182, %v220, 0.0
      %237 = vadd.xlane.f32.xlu0 %v236
      %v238 = vpop.xlane.xlu0 %237
      %v239 = vsel %vm182, %v221, 0.0
      %240 = vadd.xlane.f32.xlu0 %v239
      %v241 = vpop.xlane.xlu0 %240
      %v242 = vsel %vm182, %v222, 0.0
      %243 = vadd.xlane.f32.xlu0 %v242
      %v244 = vpop.xlane.xlu0 %243
      %v245 = vsel %vm182, %v223, 0.0
      %246 = vadd.xlane.f32.xlu0 %v245
      %v247 = vpop.xlane.xlu0 %246
      %v248 = vmul.f32 %v226, %v207
      %v249 = vmul.f32 %v229, %v207
      %v250 = vmul.f32 %v232, %v207
      %v251 = vmul.f32 %v235, %v207
      %v252 = vmul.f32 %v238, %v207
      %v253 = vmul.f32 %v241, %v207
      %v254 = vmul.f32 %v244, %v207
      %v255 = vmul.f32 %v247, %v207
      %v256 = vmul.f32 %v208, %v208
      %v257 = vmul.f32 %v209, %v209
      %v258 = vmul.f32 %v210, %v210
      %v259 = vmul.f32 %v211, %v211
      %v260 = vmul.f32 %v212, %v212
      %v261 = vmul.f32 %v213, %v213
      %v262 = vmul.f32 %v214, %v214
      %v263 = vmul.f32 %v215, %v215
      %v264 = vsub.f32 %v248, %v256
      %v265 = vsub.f32 %v249, %v257
      %v266 = vsub.f32 %v250, %v258
      %v267 = vsub.f32 %v251, %v259
      %v268 = vsub.f32 %v252, %v260
      %v269 = vsub.f32 %v253, %v261
      %v270 = vsub.f32 %v254, %v262
      %v271 = vsub.f32 %v255, %v263
      %v272 = vmax.f32 %v264, 0.0
      %v273 = vmax.f32 %v265, 0.0
      %v274 = vmax.f32 %v266, 0.0
      %v275 = vmax.f32 %v267, 0.0
      %v276 = vmax.f32 %v268, 0.0
      %v277 = vmax.f32 %v269, 0.0
      %v278 = vmax.f32 %v270, 0.0
      %v279 = vmax.f32 %v271, 0.0
      %v280 = vadd.f32 %v272, 1e-05
      %v281 = vadd.f32 %v273, 1e-05
      %v282 = vadd.f32 %v274, 1e-05
      %v283 = vadd.f32 %v275, 1e-05
      %v284 = vadd.f32 %v276, 1e-05
      %v285 = vadd.f32 %v277, 1e-05
      %v286 = vadd.f32 %v278, 1e-05
      %v287 = vadd.f32 %v279, 1e-05
      %v288 = vrsqrt.pop %v280
      %v289 = vrsqrt.pop %v281
      %v290 = vrsqrt.pop %v282
      %v291 = vrsqrt.pop %v283
      %v292 = vrsqrt.pop %v284
      %v293 = vrsqrt.pop %v285
      %v294 = vrsqrt.pop %v286
      %v295 = vrsqrt.pop %v287
      %v296 = vld [vmem:[%s1] sm:$0x1]
      %v297 = vld [vmem:[%s2] sm:$0x1]
      %v298 = vsub.f32 %v174, %v208
      %v299 = vsub.f32 %v175, %v209
      %v300 = vsub.f32 %v176, %v210
      %v301 = vsub.f32 %v177, %v211
      %v302 = vsub.f32 %v178, %v212
      %v303 = vsub.f32 %v179, %v213
      %v304 = vsub.f32 %v180, %v214
      %v305 = vsub.f32 %v181, %v215
      %v306 = vmul.f32 %v298, %v288
      %v307 = vmul.f32 %v299, %v289
      %v308 = vmul.f32 %v300, %v290
      %v309 = vmul.f32 %v301, %v291
      %v310 = vmul.f32 %v302, %v292
      %v311 = vmul.f32 %v303, %v293
      %v312 = vmul.f32 %v304, %v294
      %v313 = vmul.f32 %v305, %v295
      %v315 = vlaneseq
      %v316 = vshrl.u32 %v315, 7
      %v317 = vsub.s32 0, %v316
      %v318 = vrot.slane %v296, %v317
      %v320 = vmul.f32 %v306, %v318
      %v321 = vmul.f32 %v307, %v318
      %v322 = vmul.f32 %v308, %v318
      %v323 = vmul.f32 %v309, %v318
      %v324 = vmul.f32 %v310, %v318
      %v325 = vmul.f32 %v311, %v318
      %v326 = vmul.f32 %v312, %v318
      %v327 = vmul.f32 %v313, %v318
      %v329 = vlaneseq
      %v330 = vshrl.u32 %v329, 7
      %v331 = vsub.s32 0, %v330
      %v332 = vrot.slane %v297, %v331
      %v334 = vadd.f32 %v320, %v332
      %v335 = vadd.f32 %v321, %v332
      %v336 = vadd.f32 %v322, %v332
      %v337 = vadd.f32 %v323, %v332
      %v338 = vadd.f32 %v324, %v332
      %v339 = vadd.f32 %v325, %v332
      %v340 = vadd.f32 %v326, %v332
      %v341 = vadd.f32 %v327, %v332
      %342 = vst.msk [vmem:[%s172] sm:$0xff] %vm182, %v334
      %343 = vst.msk [vmem:[%s172 + $0x8] sm:$0xff] %vm182, %v335
      %344 = vst.msk [vmem:[%s172 + $0x10] sm:$0xff] %vm182, %v336
      %345 = vst.msk [vmem:[%s172 + $0x18] sm:$0xff] %vm182, %v337
      %346 = vst.msk [vmem:[%s172 + $0x20] sm:$0xff] %vm182, %v338
      %347 = vst.msk [vmem:[%s172 + $0x28] sm:$0xff] %vm182, %v339
      %348 = vst.msk [vmem:[%s172 + $0x30] sm:$0xff] %vm182, %v340
      %349 = vst.msk [vmem:[%s172 + $0x38] sm:$0xff] %vm182, %v341
      %s350 = smul.u32 8, %s14
      %p351 = scmp.lt.s32.totalorder %s350, 15
      %s352 = scalar_select %p351, %s350, 15
      %s353 = smul.addr %s352, 8
      %s354 = scalar_lea.vmem %s3, %s353
      // Predicated region
      $region33: #{tpu_custom_call.1} parent=31 // pred_check
        %p355 = pneg %p100
      $region34: #{tpu_custom_call.1} parent=31 // pred_check_branch
        %357 = sbr.rel (%p355) target = $region36
      $region35: #{tpu_custom_call.1} parent=31 // pred_region
        %s358 = smul.u32 8, %s14
      $region36: #{tpu_custom_call.1} parent=31 // pred_fallthru
        _
    $region32: #{tpu_custom_call.1} parent=5 // pred_fallthru
      _
    %p359 = scmp.le.s32.totalorder 2, %s9
    // Predicated region
    $region37: #{tpu_custom_call.1} parent=5 // pred_check
      %p360 = pneg %p359
    $region38: #{tpu_custom_call.1} parent=5 // pred_check_branch
      %362 = sbr.rel (%p360) target = $region40
    $region39: #{tpu_custom_call.1} parent=5 // pred_region
      %s363 = ssub.s32 %s9, 2
      // Predicated region
      $region41: #{tpu_custom_call.1} parent=39 // pred_check
        %p364 = pneg %p106
      $region42: #{tpu_custom_call.1} parent=39 // pred_check_branch
        %366 = sbr.rel (%p364) target = $region44
      $region43: #{tpu_custom_call.1} parent=39 // pred_region
        %s367 = smul.u32 8, %s15
        %p368 = scmp.lt.s32.totalorder %s367, 15
        %s369 = scalar_select %p368, %s367, 15
        %s370 = smul.addr %s369, 8
        %s371 = scalar_lea.vmem %s3, %s370
      $region44: #{tpu_custom_call.1} parent=39 // pred_fallthru
        _
    $region40: #{tpu_custom_call.1} parent=5 // pred_fallthru
      _
  $region6: #{tpu_custom_call.1} parent=0 // loop_footer
    %s13 = sadd.s32 1, %s9
  $region7: #{tpu_custom_call.1} parent=0 // loop_footer_branch
    %8 = sbr.rel target = $region3
  $region8: #{tpu_custom_call.1} parent=0 // loop_exit
    _

</llo_original>
